<compile_context>
chip_gen: v7x
topology: tpu7x:2x2x1
jax: 0.10.0
libtpu: 0.0.40
codegen_flags: <defaults>
</compile_context>

<pallas_src>
import jax
import jax.numpy as jnp
from jax import lax
from jax.experimental import pallas as pl
from jax.experimental.pallas import tpu as pltpu

# ---------------------------------------------------------------------------
# Problem sizes (small, consistent with the module's forward)
# ---------------------------------------------------------------------------
N = 2            # batch
C_IN = 4         # input channels
H = W = 16       # spatial
K = 3            # conv kernel
C_ENC = 32       # encoder output channels
HID = 64         # head hidden dim
OUT = 16         # head output dim
CK = C_IN * K * K        # im2col patch length = 36
CKB = CK + 1             # + constant-1 lane for the folded conv bias = 37
HW = H * W               # tokens per image = 256

# Lane-padded dims for the (tiny) weights / activations past the conv
CEP = 128
HIDP = 128
OUTP = 128

CHUNK = 128                       # conv rows processed per accumulation step
CHUNKS_PER_IMG = HW // CHUNK      # 2


# ---------------------------------------------------------------------------
# Fused Pallas kernel (single program): conv-matmul + ReLU + pool + MLP head
# ---------------------------------------------------------------------------
def teacher_kernel(p_ref, wc_ref, w1_ref, b1_ref, w2_ref, b2_ref, o_ref):
    # p_ref : (N*HW, CKB)  bf16 im2col patches (last lane == 1.0 for the bias)
    # wc_ref: (CKB, CEP)   bf16 conv weight, bias folded into row CK
    # w1_ref: (CEP, HIDP)  bf16 (pre-scaled by 1/HW),  b1_ref: (1, HIDP) f32
    # w2_ref: (HIDP, OUTP) bf16,                       b2_ref: (1, OUTP) f32
    # o_ref : (N, OUTP)    f32 lane-dense output block, written once

    wc = wc_ref[...]

    # --- encoder + pool: chunked conv matmul, ReLU, running f32 sum ----------
    def pool_one_image(n):
        def body(c, acc):
            off = pl.multiple_of(n * HW + c * CHUNK, CHUNK)
            rows = p_ref[pl.ds(off, CHUNK), :]                      # (CHUNK, CKB) bf16
            conv = jnp.dot(rows, wc,
                           preferred_element_type=jnp.float32)      # (CHUNK, CEP) f32
            return acc + jnp.sum(jnp.maximum(conv, 0.0),
                                 axis=0, keepdims=True)             # (1, CEP) f32
        return lax.fori_loop(0, CHUNKS_PER_IMG, body,
                             jnp.zeros((1, CEP), jnp.float32), unroll=True)

    # adaptive_avg_pool2d((1,1)).flatten(1): the 1/HW scale is folded into w1,
    # so this is a plain per-image sum.
    pooled = jnp.concatenate([pool_one_image(n) for n in range(N)], axis=0)  # (N, CEP)

    # --- head: Linear -> GELU -> Linear (bf16 operands, f32 accumulate) ------
    h = jnp.dot(pooled.astype(jnp.bfloat16), w1_ref[...],
                preferred_element_type=jnp.float32) + b1_ref[...]            # (N, HIDP)
    # TODO(synk): PyTorch nn.GELU() default is exact-erf; tanh approximation used here.
    h = jax.nn.gelu(h, approximate=True)
    out = jnp.dot(h.astype(jnp.bfloat16), w2_ref[...],
                  preferred_element_type=jnp.float32) + b2_ref[...]          # (N, OUTP)
    o_ref[...] = out.astype(o_ref.dtype)


# ---------------------------------------------------------------------------
# Wrapper-side glue: channels-last im2col (unpadded K), bias lane, packing
# ---------------------------------------------------------------------------
def build_patches(x_nchw):
    """(N, C_IN, H, W) f32 -> (N*HW, CKB) bf16, patch order (ky, kx, c) + bias lane."""
    x = jnp.transpose(x_nchw, (0, 2, 3, 1))                 # tiny NHWC transpose
    xp = jnp.pad(x, ((0, 0), (1, 1), (1, 1), (0, 0)))       # Conv2d padding=1
    cols = [xp[:, ky:ky + H, kx:kx + W, :]                  # (N, H, W, C_IN) each
            for ky in range(K) for kx in range(K)]
    p = jnp.concatenate(cols, axis=-1).reshape(N, HW, CK)   # (ky, kx, c) order
    ones = jnp.ones((N, HW, 1), p.dtype)                    # bias lane (folded bias)
    p = jnp.concatenate([p, ones], axis=-1)                 # (N, HW, CKB)
    return p.reshape(N * HW, CKB).astype(jnp.bfloat16)


def teacher_forward_impl(x_nchw, packed):
    wc_p, w1_p, b1_p, w2_p, b2_p = packed
    patches = build_patches(x_nchw)                          # (N*HW, CKB) bf16

    out_pad = pl.pallas_call(
        teacher_kernel,
        out_shape=jax.ShapeDtypeStruct((N, OUTP), jnp.float32),
        grid=(1,),                                           # single program, whole batch
        in_specs=[
            pl.BlockSpec((N * HW, CKB), lambda i: (0, 0)),   # full patches block
            pl.BlockSpec((CKB, CEP), lambda i: (0, 0)),
            pl.BlockSpec((CEP, HIDP), lambda i: (0, 0)),
            pl.BlockSpec((1, HIDP), lambda i: (0, 0)),
            pl.BlockSpec((HIDP, OUTP), lambda i: (0, 0)),
            pl.BlockSpec((1, OUTP), lambda i: (0, 0)),
        ],
        out_specs=pl.BlockSpec((N, OUTP), lambda i: (0, 0)),
        compiler_params=pltpu.CompilerParams(
            dimension_semantics=("arbitrary",)),
    )(patches, wc_p, w1_p, b1_p, w2_p, b2_p)

    return out_pad[:, :OUT]                                  # strip lane padding


teacher_forward = jax.jit(teacher_forward_impl)


# ---------------------------------------------------------------------------
# Deterministic parameter init (synthetic torch-layout weights) + packing
# ---------------------------------------------------------------------------
def make_params(key):
    k = jax.random.split(key, 6)
    wc = 0.1 * jax.random.normal(k[0], (C_ENC, C_IN, K, K), jnp.float32)  # torch layout
    bc = 0.1 * jax.random.normal(k[1], (C_ENC,), jnp.float32)
    w1 = 0.1 * jax.random.normal(k[2], (C_ENC, HID), jnp.float32)
    b1 = 0.1 * jax.random.normal(k[3], (HID,), jnp.float32)
    w2 = 0.1 * jax.random.normal(k[4], (HID, OUT), jnp.float32)
    b2 = 0.1 * jax.random.normal(k[5], (OUT,), jnp.float32)
    return wc, bc, w1, b1, w2, b2


def pack_params(raw):
    """Torch-layout params -> matmul form used by the kernel (bias / 1/HW folds)."""
    wc, bc, w1, b1, w2, b2 = raw
    # Flatten conv weight in (ky, kx, c) order to match channels-last im2col,
    # fold the conv bias into row CK (multiplied by the constant-1 patch lane).
    wc_m = jnp.transpose(wc, (2, 3, 1, 0)).reshape(CK, C_ENC)
    wc_p = (jnp.zeros((CKB, CEP), jnp.float32)
            .at[:CK, :C_ENC].set(wc_m)
            .at[CK, :C_ENC].set(bc))
    w1_p = jnp.zeros((CEP, HIDP), jnp.float32).at[:C_ENC, :HID].set(w1 / HW)  # fold 1/HW
    b1_p = jnp.zeros((1, HIDP), jnp.float32).at[0, :HID].set(b1)
    w2_p = jnp.zeros((HIDP, OUTP), jnp.float32).at[:HID, :OUT].set(w2)
    b2_p = jnp.zeros((1, OUTP), jnp.float32).at[0, :OUT].set(b2)
    return (wc_p.astype(jnp.bfloat16),
            w1_p.astype(jnp.bfloat16), b1_p,
            w2_p.astype(jnp.bfloat16), b2_p)


# ---------------------------------------------------------------------------
# References
#   1) bf16-emulating reference (same packed params / compute dtypes) -> tight tol
#   2) pure f32 module reference (mirrors the PyTorch forward)        -> loose tol
# ---------------------------------------------------------------------------
def reference_emulated(x_nchw, packed):
    wc_p, w1_p, b1_p, w2_p, b2_p = packed
    p = build_patches(x_nchw)                                          # (N*HW, CKB) bf16
    conv = jnp.dot(p, wc_p, preferred_element_type=jnp.float32)        # bias folded in
    feat = jnp.maximum(conv, 0.0).reshape(N, HW, CEP)
    pooled = jnp.sum(feat, axis=1)                                     # (N, CEP) f32
    h = jnp.dot(pooled.astype(jnp.bfloat16), w1_p,
                preferred_element_type=jnp.float32) + b1_p
    h = jax.nn.gelu(h, approximate=True)
    out = jnp.dot(h.astype(jnp.bfloat16), w2_p,
                  preferred_element_type=jnp.float32) + b2_p
    return out[:, :OUT]


def reference_f32(x_nchw, raw):
    wc, bc, w1, b1, w2, b2 = raw
    x = jnp.transpose(x_nchw, (0, 2, 3, 1))
    xp = jnp.pad(x, ((0, 0), (1, 1), (1, 1), (0, 0)))
    cols = [xp[:, ky:ky + H, kx:kx + W, :] for ky in range(K) for kx in range(K)]
    p = jnp.concatenate(cols, axis=-1).reshape(N, HW, CK)              # (ky, kx, c) order
    wc_m = jnp.transpose(wc, (2, 3, 1, 0)).reshape(CK, C_ENC)
    feat = jnp.maximum(jnp.einsum("npc,co->npo", p, wc_m) + bc, 0.0)
    pooled = jnp.mean(feat, axis=1)                                    # adaptive_avg_pool2d
    h = jax.nn.gelu(pooled @ w1 + b1, approximate=False)               # nn.GELU() default
    return h @ w2 + b2


if __name__ == "__main__":
    key = jax.random.PRNGKey(0)
    kx, kp = jax.random.split(key)
    x = jax.random.normal(kx, (N, C_IN, H, W), jnp.float32)            # NCHW input
    raw = make_params(kp)
    packed = pack_params(raw)

    out = teacher_forward(x, packed)
    out = jax.block_until_ready(out)
    assert out.shape == (N, OUT)

    # Tight check against a reference that uses the exact same compute dtypes.
    ref_emul = reference_emulated(x, packed)
    assert jnp.allclose(out, ref_emul, rtol=2e-3, atol=2e-3), \
        "Pallas output mismatch vs bf16-emulating reference"

    # Loose check against the pure-f32 module-level reference (bf16 + tanh-GELU).
    ref_f32 = reference_f32(x, raw)
    assert jnp.allclose(out, ref_f32, rtol=2e-2, atol=2e-2), \
        "Pallas output mismatch vs f32 module reference"

    print("KERNEL_OK")
</pallas_src>

<mosaic_0001>
module attributes {stable_mosaic.version = 11 : i64} {
  func.func @teacher_kernel(%arg0: i32, %arg1: memref<512x37xbf16, #tpu.memory_space<vmem>>, %arg2: memref<37x128xbf16, #tpu.memory_space<vmem>>, %arg3: memref<128x128xbf16, #tpu.memory_space<vmem>>, %arg4: memref<1x128xf32, #tpu.memory_space<vmem>>, %arg5: memref<128x128xbf16, #tpu.memory_space<vmem>>, %arg6: memref<1x128xf32, #tpu.memory_space<vmem>>, %arg7: memref<2x128xf32, #tpu.memory_space<vmem>>) attributes {dimension_semantics = [#tpu.dimension_semantics<arbitrary>], iteration_bounds = array<i64: 1>, scalar_prefetch = 0 : i64, scratch_operands = 0 : i64, tpu.core_type = #tpu.core_type<tc>, window_params = [{pipeline_mode = #tpu.pipeline_mode<synchronous>, transform_indices = @transform_0, window_bounds = array<i64: 512, 37>}, {pipeline_mode = #tpu.pipeline_mode<synchronous>, transform_indices = @transform_1, window_bounds = array<i64: 37, 128>}, {pipeline_mode = #tpu.pipeline_mode<synchronous>, transform_indices = @transform_2, window_bounds = array<i64: 128, 128>}, {pipeline_mode = #tpu.pipeline_mode<synchronous>, transform_indices = @transform_3, window_bounds = array<i64: 1, 128>}, {pipeline_mode = #tpu.pipeline_mode<synchronous>, transform_indices = @transform_4, window_bounds = array<i64: 128, 128>}, {pipeline_mode = #tpu.pipeline_mode<synchronous>, transform_indices = @transform_5, window_bounds = array<i64: 1, 128>}, {pipeline_mode = #tpu.pipeline_mode<synchronous>, transform_indices = @transform_6, window_bounds = array<i64: 2, 128>}]} {
    %c0 = arith.constant 0 : index
    %c0_0 = arith.constant 0 : index
    %0 = vector.load %arg2[%c0, %c0_0] : memref<37x128xbf16, #tpu.memory_space<vmem>>, vector<37x128xbf16>
    %cst = arith.constant 0.000000e+00 : f32
    %1 = vector.broadcast %cst : f32 to vector<1x128xf32>
    %c0_i32 = arith.constant 0 : i32
    %c128_i32 = arith.constant 128 : i32
    %2 = arith.muli %c0_i32, %c128_i32 : i32
    %c0_i32_1 = arith.constant 0 : i32
    %3 = arith.addi %c0_i32_1, %2 : i32
    %4 = tpu.assume_multiple %3, 128 : i32
    %5 = arith.index_cast %4 : i32 to index
    %c0_2 = arith.constant 0 : index
    %6 = vector.load %arg1[%5, %c0_2] : memref<512x37xbf16, #tpu.memory_space<vmem>>, vector<128x37xbf16>
    %cst_3 = arith.constant dense<0.000000e+00> : vector<128x128xf32>
    %7 = tpu.matmul %6, %0, %cst_3 {dimension_numbers = #tpu.dot_dimension_numbers<[1], [0], [0], [1], [0, 0, 1, 1], [], []>} : vector<128x37xbf16>, vector<37x128xbf16>, vector<128x128xf32> -> vector<128x128xf32>
    %cst_4 = arith.constant 0.000000e+00 : f32
    %8 = vector.broadcast %cst_4 : f32 to vector<128x128xf32>
    %9 = arith.maximumf %7, %8 : vector<128x128xf32>
    %cst_5 = arith.constant dense<0.000000e+00> : vector<128xf32>
    %10 = vector.multi_reduction <add>, %9, %cst_5 [0] : vector<128x128xf32> to vector<128xf32>
    %11 = vector.shape_cast %10 : vector<128xf32> to vector<1x128xf32>
    %12 = arith.addf %1, %11 : vector<1x128xf32>
    %c1_i32 = arith.constant 1 : i32
    %c128_i32_6 = arith.constant 128 : i32
    %13 = arith.muli %c1_i32, %c128_i32_6 : i32
    %c0_i32_7 = arith.constant 0 : i32
    %14 = arith.addi %c0_i32_7, %13 : i32
    %15 = tpu.assume_multiple %14, 128 : i32
    %16 = arith.index_cast %15 : i32 to index
    %c0_8 = arith.constant 0 : index
    %17 = vector.load %arg1[%16, %c0_8] : memref<512x37xbf16, #tpu.memory_space<vmem>>, vector<128x37xbf16>
    %cst_9 = arith.constant dense<0.000000e+00> : vector<128x128xf32>
    %18 = tpu.matmul %17, %0, %cst_9 {dimension_numbers = #tpu.dot_dimension_numbers<[1], [0], [0], [1], [0, 0, 1, 1], [], []>} : vector<128x37xbf16>, vector<37x128xbf16>, vector<128x128xf32> -> vector<128x128xf32>
    %cst_10 = arith.constant 0.000000e+00 : f32
    %19 = vector.broadcast %cst_10 : f32 to vector<128x128xf32>
    %20 = arith.maximumf %18, %19 : vector<128x128xf32>
    %cst_11 = arith.constant dense<0.000000e+00> : vector<128xf32>
    %21 = vector.multi_reduction <add>, %20, %cst_11 [0] : vector<128x128xf32> to vector<128xf32>
    %22 = vector.shape_cast %21 : vector<128xf32> to vector<1x128xf32>
    %23 = arith.addf %12, %22 : vector<1x128xf32>
    %c2_i32 = arith.constant 2 : i32
    %cst_12 = arith.constant 0.000000e+00 : f32
    %24 = vector.broadcast %cst_12 : f32 to vector<1x128xf32>
    %c0_i32_13 = arith.constant 0 : i32
    %c128_i32_14 = arith.constant 128 : i32
    %25 = arith.muli %c0_i32_13, %c128_i32_14 : i32
    %c256_i32 = arith.constant 256 : i32
    %26 = arith.addi %c256_i32, %25 : i32
    %27 = tpu.assume_multiple %26, 128 : i32
    %28 = arith.index_cast %27 : i32 to index
    %c0_15 = arith.constant 0 : index
    %29 = vector.load %arg1[%28, %c0_15] : memref<512x37xbf16, #tpu.memory_space<vmem>>, vector<128x37xbf16>
    %cst_16 = arith.constant dense<0.000000e+00> : vector<128x128xf32>
    %30 = tpu.matmul %29, %0, %cst_16 {dimension_numbers = #tpu.dot_dimension_numbers<[1], [0], [0], [1], [0, 0, 1, 1], [], []>} : vector<128x37xbf16>, vector<37x128xbf16>, vector<128x128xf32> -> vector<128x128xf32>
    %cst_17 = arith.constant 0.000000e+00 : f32
    %31 = vector.broadcast %cst_17 : f32 to vector<128x128xf32>
    %32 = arith.maximumf %30, %31 : vector<128x128xf32>
    %cst_18 = arith.constant dense<0.000000e+00> : vector<128xf32>
    %33 = vector.multi_reduction <add>, %32, %cst_18 [0] : vector<128x128xf32> to vector<128xf32>
    %34 = vector.shape_cast %33 : vector<128xf32> to vector<1x128xf32>
    %35 = arith.addf %24, %34 : vector<1x128xf32>
    %c1_i32_19 = arith.constant 1 : i32
    %c128_i32_20 = arith.constant 128 : i32
    %36 = arith.muli %c1_i32_19, %c128_i32_20 : i32
    %c256_i32_21 = arith.constant 256 : i32
    %37 = arith.addi %c256_i32_21, %36 : i32
    %38 = tpu.assume_multiple %37, 128 : i32
    %39 = arith.index_cast %38 : i32 to index
    %c0_22 = arith.constant 0 : index
    %40 = vector.load %arg1[%39, %c0_22] : memref<512x37xbf16, #tpu.memory_space<vmem>>, vector<128x37xbf16>
    %cst_23 = arith.constant dense<0.000000e+00> : vector<128x128xf32>
    %41 = tpu.matmul %40, %0, %cst_23 {dimension_numbers = #tpu.dot_dimension_numbers<[1], [0], [0], [1], [0, 0, 1, 1], [], []>} : vector<128x37xbf16>, vector<37x128xbf16>, vector<128x128xf32> -> vector<128x128xf32>
    %cst_24 = arith.constant 0.000000e+00 : f32
    %42 = vector.broadcast %cst_24 : f32 to vector<128x128xf32>
    %43 = arith.maximumf %41, %42 : vector<128x128xf32>
    %cst_25 = arith.constant dense<0.000000e+00> : vector<128xf32>
    %44 = vector.multi_reduction <add>, %43, %cst_25 [0] : vector<128x128xf32> to vector<128xf32>
    %45 = vector.shape_cast %44 : vector<128xf32> to vector<1x128xf32>
    %46 = arith.addf %35, %45 : vector<1x128xf32>
    %c2_i32_26 = arith.constant 2 : i32
    %47 = tpu.concatenate %23, %46 in 0 : vector<1x128xf32>, vector<1x128xf32> -> vector<2x128xf32>
    %48 = arith.truncf %47 : vector<2x128xf32> to vector<2x128xbf16>
    %c0_27 = arith.constant 0 : index
    %c0_28 = arith.constant 0 : index
    %49 = vector.load %arg3[%c0_27, %c0_28] : memref<128x128xbf16, #tpu.memory_space<vmem>>, vector<128x128xbf16>
    %cst_29 = arith.constant dense<0.000000e+00> : vector<2x128xf32>
    %50 = tpu.matmul %48, %49, %cst_29 {dimension_numbers = #tpu.dot_dimension_numbers<[1], [0], [0], [1], [0, 0, 1, 1], [], []>} : vector<2x128xbf16>, vector<128x128xbf16>, vector<2x128xf32> -> vector<2x128xf32>
    %c0_30 = arith.constant 0 : index
    %c0_31 = arith.constant 0 : index
    %51 = vector.load %arg4[%c0_30, %c0_31] : memref<1x128xf32, #tpu.memory_space<vmem>>, vector<1x128xf32>
    %52 = vector.broadcast %51 : vector<1x128xf32> to vector<2x128xf32>
    %53 = arith.addf %50, %52 : vector<2x128xf32>
    %54 = arith.mulf %53, %53 : vector<2x128xf32>
    %55 = arith.mulf %53, %54 : vector<2x128xf32>
    %cst_32 = arith.constant 4.471500e-02 : f32
    %56 = vector.broadcast %cst_32 : f32 to vector<2x128xf32>
    %57 = arith.mulf %56, %55 : vector<2x128xf32>
    %58 = arith.addf %53, %57 : vector<2x128xf32>
    %cst_33 = arith.constant 0.797884583 : f32
    %59 = vector.broadcast %cst_33 : f32 to vector<2x128xf32>
    %60 = arith.mulf %59, %58 : vector<2x128xf32>
    %61 = math.tanh %60 : vector<2x128xf32>
    %cst_34 = arith.constant 1.000000e+00 : f32
    %62 = vector.broadcast %cst_34 : f32 to vector<2x128xf32>
    %63 = arith.addf %62, %61 : vector<2x128xf32>
    %cst_35 = arith.constant 5.000000e-01 : f32
    %64 = vector.broadcast %cst_35 : f32 to vector<2x128xf32>
    %65 = arith.mulf %64, %63 : vector<2x128xf32>
    %66 = arith.mulf %53, %65 : vector<2x128xf32>
    %67 = arith.truncf %66 : vector<2x128xf32> to vector<2x128xbf16>
    %c0_36 = arith.constant 0 : index
    %c0_37 = arith.constant 0 : index
    %68 = vector.load %arg5[%c0_36, %c0_37] : memref<128x128xbf16, #tpu.memory_space<vmem>>, vector<128x128xbf16>
    %cst_38 = arith.constant dense<0.000000e+00> : vector<2x128xf32>
    %69 = tpu.matmul %67, %68, %cst_38 {dimension_numbers = #tpu.dot_dimension_numbers<[1], [0], [0], [1], [0, 0, 1, 1], [], []>} : vector<2x128xbf16>, vector<128x128xbf16>, vector<2x128xf32> -> vector<2x128xf32>
    %c0_39 = arith.constant 0 : index
    %c0_40 = arith.constant 0 : index
    %70 = vector.load %arg6[%c0_39, %c0_40] : memref<1x128xf32, #tpu.memory_space<vmem>>, vector<1x128xf32>
    %71 = vector.broadcast %70 : vector<1x128xf32> to vector<2x128xf32>
    %72 = arith.addf %69, %71 : vector<2x128xf32>
    %c0_41 = arith.constant 0 : index
    %c0_42 = arith.constant 0 : index
    %73 = vector.load %arg7[%c0_41, %c0_42] : memref<2x128xf32, #tpu.memory_space<vmem>>, vector<2x128xf32>
    tpu.vector_store %arg7[%c0_41, %c0_42], %72 {strides = array<i32>} : memref<2x128xf32, #tpu.memory_space<vmem>>, vector<2x128xf32>,
    return
  }
  func.func @transform_0(%arg0: i32) -> (i32, i32) {
    %c0_i32 = arith.constant 0 : i32
    %c0_i32_0 = arith.constant 0 : i32
    %c0_i32_1 = arith.constant 0 : i32
    return %c0_i32, %c0_i32_0 : i32, i32
  }
  func.func @transform_1(%arg0: i32) -> (i32, i32) {
    %c0_i32 = arith.constant 0 : i32
    %c0_i32_0 = arith.constant 0 : i32
    %c0_i32_1 = arith.constant 0 : i32
    return %c0_i32, %c0_i32_0 : i32, i32
  }
  func.func @transform_2(%arg0: i32) -> (i32, i32) {
    %c0_i32 = arith.constant 0 : i32
    %c0_i32_0 = arith.constant 0 : i32
    %c0_i32_1 = arith.constant 0 : i32
    return %c0_i32, %c0_i32_0 : i32, i32
  }
  func.func @transform_3(%arg0: i32) -> (i32, i32) {
    %c0_i32 = arith.constant 0 : i32
    %c0_i32_0 = arith.constant 0 : i32
    %c0_i32_1 = arith.constant 0 : i32
    return %c0_i32, %c0_i32_0 : i32, i32
  }
  func.func @transform_4(%arg0: i32) -> (i32, i32) {
    %c0_i32 = arith.constant 0 : i32
    %c0_i32_0 = arith.constant 0 : i32
    %c0_i32_1 = arith.constant 0 : i32
    return %c0_i32, %c0_i32_0 : i32, i32
  }
  func.func @transform_5(%arg0: i32) -> (i32, i32) {
    %c0_i32 = arith.constant 0 : i32
    %c0_i32_0 = arith.constant 0 : i32
    %c0_i32_1 = arith.constant 0 : i32
    return %c0_i32, %c0_i32_0 : i32, i32
  }
  func.func @transform_6(%arg0: i32) -> (i32, i32) {
    %c0_i32 = arith.constant 0 : i32
    %c0_i32_0 = arith.constant 0 : i32
    %c0_i32_1 = arith.constant 0 : i32
    return %c0_i32, %c0_i32_0 : i32, i32
  }
}

</mosaic_0001>

<llo_original>
// kernel: teacher_forward_impl.1
$region0: #{teacher_forward_impl.1}
  #allocation0 [shape = 'u32[]', space=smem, size = 0x4, offset = 0x4, fixed_abs, tag = 'smem constant byte address 0x4 - core index']
  #allocation1 [shape = 'u32[144,128]{1,0:T(1,128)}', space=vmem, size = 0x12000, scoped, tag = 'internal scratch']
  %s0 = inlined_call_operand.vmem [shape: bf16[512,37], index: 0, kind: input, shape index: {}]
  %s1 = inlined_call_operand.vmem [shape: bf16[37,128], index: 1, kind: input, shape index: {}]
  %s2 = inlined_call_operand.vmem [shape: bf16[128,128], index: 2, kind: input, shape index: {}]
  %s3 = inlined_call_operand.vmem [shape: f32[1,128], index: 3, kind: input, shape index: {}]
  %s4 = inlined_call_operand.vmem [shape: bf16[128,128], index: 4, kind: input, shape index: {}]
  %s5 = inlined_call_operand.vmem [shape: f32[1,128], index: 5, kind: input, shape index: {}]
  %s6 = inlined_call_operand.hbm [shape: f32[2,128], index: 6, kind: output, shape index: {}]
  %s7 = sld [smem:[#allocation0]]
  $region34: #{teacher_forward_impl.1} parent=0
    _
  %s9 = ssub.s32 1, %s7
  %s10 = scalar_select 0, %s9, %s7
  $region1: #{teacher_forward_impl.1} parent=0
    #allocation2 [shape = 'u8[1024]{0}', space=vmem, size = 0x400, scoped, tag = 'output window, operand 0, single buffered']
    #allocation3 [shape = 's32[1]{0}', space=sflag, size = 0x4, scoped, tag = 'scoped memory for teacher_forward_impl.1']
    %11 = vsyncpa [#allocation3], 0
    // Predicated region
    $region2: #{teacher_forward_impl.1} parent=1 // pred_check
      _
    $region3: #{teacher_forward_impl.1} parent=1 // pred_check_branch
      %13 = sbr.rel (0) target = $region5
    $region4: #{teacher_forward_impl.1} parent=1 // pred_region
      _
    $region5: #{teacher_forward_impl.1} parent=1 // pred_fallthru
      _
    // Predicated region
    $region6: #{teacher_forward_impl.1} parent=1 // pred_check
      _
    $region7: #{teacher_forward_impl.1} parent=1 // pred_check_branch
      %15 = sbr.rel (0) target = $region9
    $region8: #{teacher_forward_impl.1} parent=1 // pred_region
      _
    $region9: #{teacher_forward_impl.1} parent=1 // pred_fallthru
      _
    // Predicated region
    $region10: #{teacher_forward_impl.1} parent=1 // pred_check
      _
    $region11: #{teacher_forward_impl.1} parent=1 // pred_check_branch
      %17 = sbr.rel (0) target = $region13
    $region12: #{teacher_forward_impl.1} parent=1 // pred_region
      _
    $region13: #{teacher_forward_impl.1} parent=1 // pred_fallthru
      _
    // Predicated region
    $region14: #{teacher_forward_impl.1} parent=1 // pred_check
      _
    $region15: #{teacher_forward_impl.1} parent=1 // pred_check_branch
      %19 = sbr.rel (0) target = $region17
    $region16: #{teacher_forward_impl.1} parent=1 // pred_region
      _
    $region17: #{teacher_forward_impl.1} parent=1 // pred_fallthru
      _
    // Predicated region
    $region18: #{teacher_forward_impl.1} parent=1 // pred_check
      _
    $region19: #{teacher_forward_impl.1} parent=1 // pred_check_branch
      %21 = sbr.rel (0) target = $region21
    $region20: #{teacher_forward_impl.1} parent=1 // pred_region
      _
    $region21: #{teacher_forward_impl.1} parent=1 // pred_fallthru
      _
    // Predicated region
    $region22: #{teacher_forward_impl.1} parent=1 // pred_check
      _
    $region23: #{teacher_forward_impl.1} parent=1 // pred_check_branch
      %23 = sbr.rel (0) target = $region25
    $region24: #{teacher_forward_impl.1} parent=1 // pred_region
      _
    $region25: #{teacher_forward_impl.1} parent=1 // pred_fallthru
      _
    %v25 = vld [vmem:[%s1] sm:$0xf]
    %v26 = vld [vmem:[%s1 + $0x4] sm:$0xf]
    %v27 = vld [vmem:[%s1 + $0x8] sm:$0xf]
    %v28 = vld [vmem:[%s1 + $0xc] sm:$0xf]
    %v29 = vld [vmem:[%s1 + $0x10] sm:$0x7]
    %v30 = vld [vmem:[%s0] sm:$0xf]
    %v31 = vld [vmem:[%s0 + $0x4] sm:$0xf]
    %v32 = vld [vmem:[%s0 + $0x8] sm:$0xf]
    %v33 = vld [vmem:[%s0 + $0xc] sm:$0xf]
    %v34 = vld [vmem:[%s0 + $0x10] sm:$0xf]
    %v35 = vld [vmem:[%s0 + $0x14] sm:$0xf]
    %v36 = vld [vmem:[%s0 + $0x18] sm:$0xf]
    %v37 = vld [vmem:[%s0 + $0x1c] sm:$0xf]
    %v38 = vld [vmem:[%s0 + $0x20] sm:$0xf]
    %v39 = vld [vmem:[%s0 + $0x24] sm:$0xf]
    %v40 = vld [vmem:[%s0 + $0x28] sm:$0xf]
    %v41 = vld [vmem:[%s0 + $0x2c] sm:$0xf]
    %v42 = vld [vmem:[%s0 + $0x30] sm:$0xf]
    %v43 = vld [vmem:[%s0 + $0x34] sm:$0xf]
    %v44 = vld [vmem:[%s0 + $0x38] sm:$0xf]
    %v45 = vld [vmem:[%s0 + $0x3c] sm:$0xf]
    %v62 = vunpack.c.l.b16 %v30
    %v63 = vunpack.c.l.b16 %v31
    %v64 = vunpack.c.l.b16 %v32
    %v65 = vunpack.c.l.b16 %v33
    %v66 = vunpack.c.l.b16 %v34
    %v67 = vunpack.c.l.b16 %v35
    %v68 = vunpack.c.l.b16 %v36
    %v69 = vunpack.c.l.b16 %v37
    %v70 = vunpack.c.l.b16 %v38
    %v71 = vunpack.c.l.b16 %v39
    %v72 = vunpack.c.l.b16 %v40
    %v73 = vunpack.c.l.b16 %v41
    %v74 = vunpack.c.l.b16 %v42
    %v75 = vunpack.c.l.b16 %v43
    %v76 = vunpack.c.l.b16 %v44
    %v77 = vunpack.c.l.b16 %v45
    %v78 = vpack.c.b16 %v63, %v62
    %v79 = vpack.c.b16 %v65, %v64
    %v80 = vpack.c.b16 %v67, %v66
    %v81 = vpack.c.b16 %v69, %v68
    %v82 = vpack.c.b16 %v71, %v70
    %v83 = vpack.c.b16 %v73, %v72
    %v84 = vpack.c.b16 %v75, %v74
    %v85 = vpack.c.b16 %v77, %v76
    %v91 = vunpack.c.l.b16 %v25
    %v92 = vunpack.c.l.b16 %v26
    %v93 = vunpack.c.l.b16 %v27
    %v94 = vunpack.c.l.b16 %v28
    %v95 = vunpack.c.l.b16 %v29
    %v96 = vpack.c.b16 %v92, %v91
    %v97 = vpack.c.b16 %v94, %v93
    %v98 = vpack.c.b16 %v95, %v95
    %vm101 = vcmask 302080
    %v103 = vsel %vm101, %v78, 0
    %v106 = vsel %vm101, %v79, 0
    %v109 = vsel %vm101, %v80, 0
    %v112 = vsel %vm101, %v81, 0
    %v115 = vsel %vm101, %v82, 0
    %v118 = vsel %vm101, %v83, 0
    %v121 = vsel %vm101, %v84, 0
    %v124 = vsel %vm101, %v85, 0
    %vm126 = vcmask 1041408
    %vm127 = vcmask 1042432
    %v128 = vsel %vm126, 4294967295, 65535
    %v129 = vsel %vm127, %v128, 0
    %v131 = vand.u32 %v98, %v129
    %133 = vmatprep.subr.bf16.mxu0 0
    %134 = vmatpush1.bf16.msra.mxu0 %v96
    %135 = vmatprep.subr.bf16.mxu0 0
    %136 = vmatpush1.bf16.msra.mxu0 %v97
    %137 = vmatprep.subr.bf16.mxu0 0
    %138 = vmatpush1.bf16.msra.mxu0 %v131
    %139 = vmatprep.subr.bf16.mxu0 0
    %140 = vmatpush1.bf16.msra.mxu0 0
    %141 = vmatprep.subr.bf16.mxu0 0
    %142 = vmatpush1.bf16.msra.mxu0 0
    %143 = vmatprep.subr.bf16.mxu0 0
    %144 = vmatpush1.bf16.msra.mxu0 0
    %145 = vmatprep.subr.bf16.mxu0 0
    %146 = vmatpush1.bf16.msra.mxu0 0
    %147 = vmatprep.subr.bf16.mxu0 0
    %148 = vmatpush1.bf16.msra.mxu0 0
    %149 = vmatprep.subr.bf16.mxu0 0
    %150 = vmatpush1.bf16.msra.mxu0 0
    %151 = vmatprep.subr.bf16.mxu0 0
    %152 = vmatpush1.bf16.msra.mxu0 0
    %153 = vmatprep.subr.bf16.mxu0 0
    %154 = vmatpush1.bf16.msra.mxu0 0
    %155 = vmatprep.subr.bf16.mxu0 0
    %156 = vmatpush1.bf16.msra.mxu0 0
    %157 = vmatprep.subr.bf16.mxu0 0
    %158 = vmatpush1.bf16.msra.mxu0 0
    %159 = vmatprep.subr.bf16.mxu0 0
    %160 = vmatpush1.bf16.msra.mxu0 0
    %161 = vmatprep.subr.bf16.mxu0 0
    %162 = vmatpush1.bf16.msra.mxu0 0
    %163 = vmatprep.subr.bf16.mxu0 0
    %164 = vmatpush1.bf16.msra.mxu0 0
    %165 = vmatprep.mubr.bf16.mxu0 0
    %166 = vmatmul.mubr.bf16.gmra.mrb[0].mxu0 %v103
    %v167 = vpop.f32.mrb[0].mxu0
    %v168 = vadd.f32 0.0, %v167
    %v169 = vpop.f32.mrb[0].mxu0
    %v170 = vpop.f32.mrb[0].mxu0
    %v171 = vadd.f32 0.0, %v170
    %v172 = vpop.f32.mrb[0].mxu0
    %173 = vmatprep.mubr.bf16.mxu0 0
    %174 = vmatmul.mubr.bf16.gmra.mrb[0].mxu0 %v106
    %v175 = vpop.f32.mrb[0].mxu0
    %v176 = vadd.f32 0.0, %v175
    %v177 = vpop.f32.mrb[0].mxu0
    %v178 = vpop.f32.mrb[0].mxu0
    %v179 = vadd.f32 0.0, %v178
    %v180 = vpop.f32.mrb[0].mxu0
    %181 = vmatprep.mubr.bf16.mxu0 0
    %182 = vmatmul.mubr.bf16.gmra.mrb[0].mxu0 %v109
    %v183 = vpop.f32.mrb[0].mxu0
    %v184 = vadd.f32 0.0, %v183
    %v185 = vpop.f32.mrb[0].mxu0
    %v186 = vpop.f32.mrb[0].mxu0
    %v187 = vadd.f32 0.0, %v186
    %v188 = vpop.f32.mrb[0].mxu0
    %189 = vmatprep.mubr.bf16.mxu0 0
    %190 = vmatmul.mubr.bf16.gmra.mrb[0].mxu0 %v112
    %v191 = vpop.f32.mrb[0].mxu0
    %v192 = vadd.f32 0.0, %v191
    %v193 = vpop.f32.mrb[0].mxu0
    %v194 = vpop.f32.mrb[0].mxu0
    %v195 = vadd.f32 0.0, %v194
    %v196 = vpop.f32.mrb[0].mxu0
    %197 = vmatprep.mubr.bf16.mxu0 0
    %198 = vmatmul.mubr.bf16.gmra.mrb[0].mxu0 %v115
    %v199 = vpop.f32.mrb[0].mxu0
    %v200 = vadd.f32 0.0, %v199
    %v201 = vpop.f32.mrb[0].mxu0
    %v202 = vpop.f32.mrb[0].mxu0
    %v203 = vadd.f32 0.0, %v202
    %v204 = vpop.f32.mrb[0].mxu0
    %205 = vmatprep.mubr.bf16.mxu0 0
    %206 = vmatmul.mubr.bf16.gmra.mrb[0].mxu0 %v118
    %v207 = vpop.f32.mrb[0].mxu0
    %v208 = vadd.f32 0.0, %v207
    %v209 = vpop.f32.mrb[0].mxu0
    %v210 = vpop.f32.mrb[0].mxu0
    %v211 = vadd.f32 0.0, %v210
    %v212 = vpop.f32.mrb[0].mxu0
    %213 = vmatprep.mubr.bf16.mxu0 0
    %214 = vmatmul.mubr.bf16.gmra.mrb[0].mxu0 %v121
    %v215 = vpop.f32.mrb[0].mxu0
    %v216 = vadd.f32 0.0, %v215
    %v217 = vpop.f32.mrb[0].mxu0
    %v218 = vpop.f32.mrb[0].mxu0
    %v219 = vadd.f32 0.0, %v218
    %v220 = vpop.f32.mrb[0].mxu0
    %221 = vmatprep.mubr.bf16.mxu0 0
    %222 = vmatmul.mubr.bf16.gmra.mrb[0].mxu0 %v124
    %v223 = vpop.f32.mrb[0].mxu0
    %v224 = vadd.f32 0.0, %v223
    %v225 = vpop.f32.mrb[0].mxu0
    %v226 = vpop.f32.mrb[0].mxu0
    %v227 = vadd.f32 0.0, %v226
    %v228 = vpop.f32.mrb[0].mxu0
    %229 = vdwg.mxu0
    %v230 = vmax.f32 %v168, 0.0
    %v231 = vmax.f32 %v171, 0.0
    %v232 = vmax.f32 %v176, 0.0
    %v233 = vmax.f32 %v179, 0.0
    %v234 = vmax.f32 %v184, 0.0
    %v235 = vmax.f32 %v187, 0.0
    %v236 = vmax.f32 %v192, 0.0
    %v237 = vmax.f32 %v195, 0.0
    %v238 = vmax.f32 %v200, 0.0
    %v239 = vmax.f32 %v203, 0.0
    %v240 = vmax.f32 %v208, 0.0
    %v241 = vmax.f32 %v211, 0.0
    %v242 = vmax.f32 %v216, 0.0
    %v243 = vmax.f32 %v219, 0.0
    %v244 = vmax.f32 %v224, 0.0
    %v245 = vmax.f32 %v227, 0.0
    %v246 = vadd.f32 %v230, %v231
    %v247 = vadd.f32 %v246, %v232
    %v248 = vadd.f32 %v247, %v233
    %v249 = vadd.f32 %v248, %v234
    %v250 = vadd.f32 %v249, %v235
    %v251 = vadd.f32 %v250, %v236
    %v252 = vadd.f32 %v251, %v237
    %v253 = vadd.f32 %v252, %v238
    %v254 = vadd.f32 %v253, %v239
    %v255 = vadd.f32 %v254, %v240
    %v256 = vadd.f32 %v255, %v241
    %v257 = vadd.f32 %v256, %v242
    %v258 = vadd.f32 %v257, %v243
    %v259 = vadd.f32 %v258, %v244
    %v260 = vadd.f32 %v259, %v245
    %v261 = vrot.slane %v260, 4
    %v262 = vadd.f32 %v260, %v261
    %v263 = vrot.slane %v262, 2
    %v264 = vadd.f32 %v262, %v263
    %v265 = vrot.slane %v264, 1
    %v266 = vadd.f32 %v264, %v265
    %v267 = vadd.f32 %v266, 0.0
    %s268 = scalar_lea.vmem %s0, 64
    %v269 = vld [vmem:[%s268] sm:$0xf]
    %v270 = vld [vmem:[%s268 + $0x4] sm:$0xf]
    %v271 = vld [vmem:[%s268 + $0x8] sm:$0xf]
    %v272 = vld [vmem:[%s268 + $0xc] sm:$0xf]
    %v273 = vld [vmem:[%s268 + $0x10] sm:$0xf]
    %v274 = vld [vmem:[%s268 + $0x14] sm:$0xf]
    %v275 = vld [vmem:[%s268 + $0x18] sm:$0xf]
    %v276 = vld [vmem:[%s268 + $0x1c] sm:$0xf]
    %v277 = vld [vmem:[%s268 + $0x20] sm:$0xf]
    %v278 = vld [vmem:[%s268 + $0x24] sm:$0xf]
    %v279 = vld [vmem:[%s268 + $0x28] sm:$0xf]
    %v280 = vld [vmem:[%s268 + $0x2c] sm:$0xf]
    %v281 = vld [vmem:[%s268 + $0x30] sm:$0xf]
    %v282 = vld [vmem:[%s268 + $0x34] sm:$0xf]
    %v283 = vld [vmem:[%s268 + $0x38] sm:$0xf]
    %v284 = vld [vmem:[%s268 + $0x3c] sm:$0xf]
    %v301 = vunpack.c.l.b16 %v269
    %v302 = vunpack.c.l.b16 %v270
    %v303 = vunpack.c.l.b16 %v271
    %v304 = vunpack.c.l.b16 %v272
    %v305 = vunpack.c.l.b16 %v273
    %v306 = vunpack.c.l.b16 %v274
    %v307 = vunpack.c.l.b16 %v275
    %v308 = vunpack.c.l.b16 %v276
    %v309 = vunpack.c.l.b16 %v277
    %v310 = vunpack.c.l.b16 %v278
    %v311 = vunpack.c.l.b16 %v279
    %v312 = vunpack.c.l.b16 %v280
    %v313 = vunpack.c.l.b16 %v281
    %v314 = vunpack.c.l.b16 %v282
    %v315 = vunpack.c.l.b16 %v283
    %v316 = vunpack.c.l.b16 %v284
    %v317 = vpack.c.b16 %v302, %v301
    %v318 = vpack.c.b16 %v304, %v303
    %v319 = vpack.c.b16 %v306, %v305
    %v320 = vpack.c.b16 %v308, %v307
    %v321 = vpack.c.b16 %v310, %v309
    %v322 = vpack.c.b16 %v312, %v311
    %v323 = vpack.c.b16 %v314, %v313
    %v324 = vpack.c.b16 %v316, %v315
    %v326 = vsel %vm101, %v317, 0
    %v329 = vsel %vm101, %v318, 0
    %v332 = vsel %vm101, %v319, 0
    %v335 = vsel %vm101, %v320, 0
    %v338 = vsel %vm101, %v321, 0
    %v341 = vsel %vm101, %v322, 0
    %v344 = vsel %vm101, %v323, 0
    %v347 = vsel %vm101, %v324, 0
    %349 = vmatprep.subr.bf16.mxu0 0
    %350 = vmatpush1.bf16.msra.mxu0 %v96
    %351 = vmatprep.subr.bf16.mxu0 0
    %352 = vmatpush1.bf16.msra.mxu0 %v97
    %353 = vmatprep.subr.bf16.mxu0 0
    %354 = vmatpush1.bf16.msra.mxu0 %v131
    %355 = vmatprep.subr.bf16.mxu0 0
    %356 = vmatpush1.bf16.msra.mxu0 0
    %357 = vmatprep.subr.bf16.mxu0 0
    %358 = vmatpush1.bf16.msra.mxu0 0
    %359 = vmatprep.subr.bf16.mxu0 0
    %360 = vmatpush1.bf16.msra.mxu0 0
    %361 = vmatprep.subr.bf16.mxu0 0
    %362 = vmatpush1.bf16.msra.mxu0 0
    %363 = vmatprep.subr.bf16.mxu0 0
    %364 = vmatpush1.bf16.msra.mxu0 0
    %365 = vmatprep.subr.bf16.mxu0 0
    %366 = vmatpush1.bf16.msra.mxu0 0
    %367 = vmatprep.subr.bf16.mxu0 0
    %368 = vmatpush1.bf16.msra.mxu0 0
    %369 = vmatprep.subr.bf16.mxu0 0
    %370 = vmatpush1.bf16.msra.mxu0 0
    %371 = vmatprep.subr.bf16.mxu0 0
    %372 = vmatpush1.bf16.msra.mxu0 0
    %373 = vmatprep.subr.bf16.mxu0 0
    %374 = vmatpush1.bf16.msra.mxu0 0
    %375 = vmatprep.subr.bf16.mxu0 0
    %376 = vmatpush1.bf16.msra.mxu0 0
    %377 = vmatprep.subr.bf16.mxu0 0
    %378 = vmatpush1.bf16.msra.mxu0 0
    %379 = vmatprep.subr.bf16.mxu0 0
    %380 = vmatpush1.bf16.msra.mxu0 0
    %381 = vmatprep.mubr.bf16.mxu0 0
    %382 = vmatmul.mubr.bf16.gmra.mrb[0].mxu0 %v326
    %v383 = vpop.f32.mrb[0].mxu0
    %v384 = vadd.f32 0.0, %v383
    %v385 = vpop.f32.mrb[0].mxu0
    %v386 = vpop.f32.mrb[0].mxu0
    %v387 = vadd.f32 0.0, %v386
    %v388 = vpop.f32.mrb[0].mxu0
    %389 = vmatprep.mubr.bf16.mxu0 0
    %390 = vmatmul.mubr.bf16.gmra.mrb[0].mxu0 %v329
    %v391 = vpop.f32.mrb[0].mxu0
    %v392 = vadd.f32 0.0, %v391
    %v393 = vpop.f32.mrb[0].mxu0
    %v394 = vpop.f32.mrb[0].mxu0
    %v395 = vadd.f32 0.0, %v394
    %v396 = vpop.f32.mrb[0].mxu0
    %397 = vmatprep.mubr.bf16.mxu0 0
    %398 = vmatmul.mubr.bf16.gmra.mrb[0].mxu0 %v332
    %v399 = vpop.f32.mrb[0].mxu0
    %v400 = vadd.f32 0.0, %v399
    %v401 = vpop.f32.mrb[0].mxu0
    %v402 = vpop.f32.mrb[0].mxu0
    %v403 = vadd.f32 0.0, %v402
    %v404 = vpop.f32.mrb[0].mxu0
    %405 = vmatprep.mubr.bf16.mxu0 0
    %406 = vmatmul.mubr.bf16.gmra.mrb[0].mxu0 %v335
    %v407 = vpop.f32.mrb[0].mxu0
    %v408 = vadd.f32 0.0, %v407
    %v409 = vpop.f32.mrb[0].mxu0
    %v410 = vpop.f32.mrb[0].mxu0
    %v411 = vadd.f32 0.0, %v410
    %v412 = vpop.f32.mrb[0].mxu0
    %413 = vmatprep.mubr.bf16.mxu0 0
    %414 = vmatmul.mubr.bf16.gmra.mrb[0].mxu0 %v338
    %v415 = vpop.f32.mrb[0].mxu0
    %v416 = vadd.f32 0.0, %v415
    %v417 = vpop.f32.mrb[0].mxu0
    %v418 = vpop.f32.mrb[0].mxu0
    %v419 = vadd.f32 0.0, %v418
    %v420 = vpop.f32.mrb[0].mxu0
    %421 = vmatprep.mubr.bf16.mxu0 0
    %422 = vmatmul.mubr.bf16.gmra.mrb[0].mxu0 %v341
    %v423 = vpop.f32.mrb[0].mxu0
    %v424 = vadd.f32 0.0, %v423
    %v425 = vpop.f32.mrb[0].mxu0
    %v426 = vpop.f32.mrb[0].mxu0
    %v427 = vadd.f32 0.0, %v426
    %v428 = vpop.f32.mrb[0].mxu0
    %429 = vmatprep.mubr.bf16.mxu0 0
    %430 = vmatmul.mubr.bf16.gmra.mrb[0].mxu0 %v344
    %v431 = vpop.f32.mrb[0].mxu0
    %v432 = vadd.f32 0.0, %v431
    %v433 = vpop.f32.mrb[0].mxu0
    %v434 = vpop.f32.mrb[0].mxu0
    %v435 = vadd.f32 0.0, %v434
    %v436 = vpop.f32.mrb[0].mxu0
    %437 = vmatprep.mubr.bf16.mxu0 0
    %438 = vmatmul.mubr.bf16.gmra.mrb[0].mxu0 %v347
    %v439 = vpop.f32.mrb[0].mxu0
    %v440 = vadd.f32 0.0, %v439
    %v441 = vpop.f32.mrb[0].mxu0
    %v442 = vpop.f32.mrb[0].mxu0
    %v443 = vadd.f32 0.0, %v442
    %v444 = vpop.f32.mrb[0].mxu0
    %445 = vdwg.mxu0
    %v446 = vmax.f32 %v384, 0.0
    %v447 = vmax.f32 %v387, 0.0
    %v448 = vmax.f32 %v392, 0.0
    %v449 = vmax.f32 %v395, 0.0
    %v450 = vmax.f32 %v400, 0.0
    %v451 = vmax.f32 %v403, 0.0
    %v452 = vmax.f32 %v408, 0.0
    %v453 = vmax.f32 %v411, 0.0
    %v454 = vmax.f32 %v416, 0.0
    %v455 = vmax.f32 %v419, 0.0
    %v456 = vmax.f32 %v424, 0.0
    %v457 = vmax.f32 %v427, 0.0
    %v458 = vmax.f32 %v432, 0.0
    %v459 = vmax.f32 %v435, 0.0
    %v460 = vmax.f32 %v440, 0.0
    %v461 = vmax.f32 %v443, 0.0
    %v462 = vadd.f32 %v446, %v447
    %v463 = vadd.f32 %v462, %v448
    %v464 = vadd.f32 %v463, %v449
    %v465 = vadd.f32 %v464, %v450
    %v466 = vadd.f32 %v465, %v451
    %v467 = vadd.f32 %v466, %v452
    %v468 = vadd.f32 %v467, %v453
    %v469 = vadd.f32 %v468, %v454
    %v470 = vadd.f32 %v469, %v455
    %v471 = vadd.f32 %v470, %v456
    %v472 = vadd.f32 %v471, %v457
    %v473 = vadd.f32 %v472, %v458
    %v474 = vadd.f32 %v473, %v459
    %v475 = vadd.f32 %v474, %v460
    %v476 = vadd.f32 %v475, %v461
    %v477 = vrot.slane %v476, 4
    %v478 = vadd.f32 %v476, %v477
    %v479 = vrot.slane %v478, 2
    %v480 = vadd.f32 %v478, %v479
    %v481 = vrot.slane %v480, 1
    %v482 = vadd.f32 %v480, %v481
    %v483 = vadd.f32 %v267, %v482
    %s484 = scalar_lea.vmem %s0, 128
    %v485 = vld [vmem:[%s484] sm:$0xf]
    %v486 = vld [vmem:[%s484 + $0x4] sm:$0xf]
    %v487 = vld [vmem:[%s484 + $0x8] sm:$0xf]
    %v488 = vld [vmem:[%s484 + $0xc] sm:$0xf]
    %v489 = vld [vmem:[%s484 + $0x10] sm:$0xf]
    %v490 = vld [vmem:[%s484 + $0x14] sm:$0xf]
    %v491 = vld [vmem:[%s484 + $0x18] sm:$0xf]
    %v492 = vld [vmem:[%s484 + $0x1c] sm:$0xf]
    %v493 = vld [vmem:[%s484 + $0x20] sm:$0xf]
    %v494 = vld [vmem:[%s484 + $0x24] sm:$0xf]
    %v495 = vld [vmem:[%s484 + $0x28] sm:$0xf]
    %v496 = vld [vmem:[%s484 + $0x2c] sm:$0xf]
    %v497 = vld [vmem:[%s484 + $0x30] sm:$0xf]
    %v498 = vld [vmem:[%s484 + $0x34] sm:$0xf]
    %v499 = vld [vmem:[%s484 + $0x38] sm:$0xf]
    %v500 = vld [vmem:[%s484 + $0x3c] sm:$0xf]
    %v517 = vunpack.c.l.b16 %v485
    %v518 = vunpack.c.l.b16 %v486
    %v519 = vunpack.c.l.b16 %v487
    %v520 = vunpack.c.l.b16 %v488
    %v521 = vunpack.c.l.b16 %v489
    %v522 = vunpack.c.l.b16 %v490
    %v523 = vunpack.c.l.b16 %v491
    %v524 = vunpack.c.l.b16 %v492
    %v525 = vunpack.c.l.b16 %v493
    %v526 = vunpack.c.l.b16 %v494
    %v527 = vunpack.c.l.b16 %v495
    %v528 = vunpack.c.l.b16 %v496
    %v529 = vunpack.c.l.b16 %v497
    %v530 = vunpack.c.l.b16 %v498
    %v531 = vunpack.c.l.b16 %v499
    %v532 = vunpack.c.l.b16 %v500
    %v533 = vpack.c.b16 %v518, %v517
    %v534 = vpack.c.b16 %v520, %v519
    %v535 = vpack.c.b16 %v522, %v521
    %v536 = vpack.c.b16 %v524, %v523
    %v537 = vpack.c.b16 %v526, %v525
    %v538 = vpack.c.b16 %v528, %v527
    %v539 = vpack.c.b16 %v530, %v529
    %v540 = vpack.c.b16 %v532, %v531
    %v542 = vsel %vm101, %v533, 0
    %v545 = vsel %vm101, %v534, 0
    %v548 = vsel %vm101, %v535, 0
    %v551 = vsel %vm101, %v536, 0
    %v554 = vsel %vm101, %v537, 0
    %v557 = vsel %vm101, %v538, 0
    %v560 = vsel %vm101, %v539, 0
    %v563 = vsel %vm101, %v540, 0
    %565 = vmatprep.subr.bf16.mxu0 0
    %566 = vmatpush1.bf16.msra.mxu0 %v96
    %567 = vmatprep.subr.bf16.mxu0 0
    %568 = vmatpush1.bf16.msra.mxu0 %v97
    %569 = vmatprep.subr.bf16.mxu0 0
    %570 = vmatpush1.bf16.msra.mxu0 %v131
    %571 = vmatprep.subr.bf16.mxu0 0
    %572 = vmatpush1.bf16.msra.mxu0 0
    %573 = vmatprep.subr.bf16.mxu0 0
    %574 = vmatpush1.bf16.msra.mxu0 0
    %575 = vmatprep.subr.bf16.mxu0 0
    %576 = vmatpush1.bf16.msra.mxu0 0
    %577 = vmatprep.subr.bf16.mxu0 0
    %578 = vmatpush1.bf16.msra.mxu0 0
    %579 = vmatprep.subr.bf16.mxu0 0
    %580 = vmatpush1.bf16.msra.mxu0 0
    %581 = vmatprep.subr.bf16.mxu0 0
    %582 = vmatpush1.bf16.msra.mxu0 0
    %583 = vmatprep.subr.bf16.mxu0 0
    %584 = vmatpush1.bf16.msra.mxu0 0
    %585 = vmatprep.subr.bf16.mxu0 0
    %586 = vmatpush1.bf16.msra.mxu0 0
    %587 = vmatprep.subr.bf16.mxu0 0
    %588 = vmatpush1.bf16.msra.mxu0 0
    %589 = vmatprep.subr.bf16.mxu0 0
    %590 = vmatpush1.bf16.msra.mxu0 0
    %591 = vmatprep.subr.bf16.mxu0 0
    %592 = vmatpush1.bf16.msra.mxu0 0
    %593 = vmatprep.subr.bf16.mxu0 0
    %594 = vmatpush1.bf16.msra.mxu0 0
    %595 = vmatprep.subr.bf16.mxu0 0
    %596 = vmatpush1.bf16.msra.mxu0 0
    %597 = vmatprep.mubr.bf16.mxu0 0
    %598 = vmatmul.mubr.bf16.gmra.mrb[0].mxu0 %v542
    %v599 = vpop.f32.mrb[0].mxu0
    %v600 = vadd.f32 0.0, %v599
    %v601 = vpop.f32.mrb[0].mxu0
    %v602 = vpop.f32.mrb[0].mxu0
    %v603 = vadd.f32 0.0, %v602
    %v604 = vpop.f32.mrb[0].mxu0
    %605 = vmatprep.mubr.bf16.mxu0 0
    %606 = vmatmul.mubr.bf16.gmra.mrb[0].mxu0 %v545
    %v607 = vpop.f32.mrb[0].mxu0
    %v608 = vadd.f32 0.0, %v607
    %v609 = vpop.f32.mrb[0].mxu0
    %v610 = vpop.f32.mrb[0].mxu0
    %v611 = vadd.f32 0.0, %v610
    %v612 = vpop.f32.mrb[0].mxu0
    %613 = vmatprep.mubr.bf16.mxu0 0
    %614 = vmatmul.mubr.bf16.gmra.mrb[0].mxu0 %v548
    %v615 = vpop.f32.mrb[0].mxu0
    %v616 = vadd.f32 0.0, %v615
    %v617 = vpop.f32.mrb[0].mxu0
    %v618 = vpop.f32.mrb[0].mxu0
    %v619 = vadd.f32 0.0, %v618
    %v620 = vpop.f32.mrb[0].mxu0
    %621 = vmatprep.mubr.bf16.mxu0 0
    %622 = vmatmul.mubr.bf16.gmra.mrb[0].mxu0 %v551
    %v623 = vpop.f32.mrb[0].mxu0
    %v624 = vadd.f32 0.0, %v623
    %v625 = vpop.f32.mrb[0].mxu0
    %v626 = vpop.f32.mrb[0].mxu0
    %v627 = vadd.f32 0.0, %v626
    %v628 = vpop.f32.mrb[0].mxu0
    %629 = vmatprep.mubr.bf16.mxu0 0
    %630 = vmatmul.mubr.bf16.gmra.mrb[0].mxu0 %v554
    %v631 = vpop.f32.mrb[0].mxu0
    %v632 = vadd.f32 0.0, %v631
    %v633 = vpop.f32.mrb[0].mxu0
    %v634 = vpop.f32.mrb[0].mxu0
    %v635 = vadd.f32 0.0, %v634
    %v636 = vpop.f32.mrb[0].mxu0
    %637 = vmatprep.mubr.bf16.mxu0 0
    %638 = vmatmul.mubr.bf16.gmra.mrb[0].mxu0 %v557
    %v639 = vpop.f32.mrb[0].mxu0
    %v640 = vadd.f32 0.0, %v639
    %v641 = vpop.f32.mrb[0].mxu0
    %v642 = vpop.f32.mrb[0].mxu0
    %v643 = vadd.f32 0.0, %v642
    %v644 = vpop.f32.mrb[0].mxu0
    %645 = vmatprep.mubr.bf16.mxu0 0
    %646 = vmatmul.mubr.bf16.gmra.mrb[0].mxu0 %v560
    %v647 = vpop.f32.mrb[0].mxu0
    %v648 = vadd.f32 0.0, %v647
    %v649 = vpop.f32.mrb[0].mxu0
    %v650 = vpop.f32.mrb[0].mxu0
    %v651 = vadd.f32 0.0, %v650
    %v652 = vpop.f32.mrb[0].mxu0
    %653 = vmatprep.mubr.bf16.mxu0 0
    %654 = vmatmul.mubr.bf16.gmra.mrb[0].mxu0 %v563
    %v655 = vpop.f32.mrb[0].mxu0
    %v656 = vadd.f32 0.0, %v655
    %v657 = vpop.f32.mrb[0].mxu0
    %v658 = vpop.f32.mrb[0].mxu0
    %v659 = vadd.f32 0.0, %v658
    %v660 = vpop.f32.mrb[0].mxu0
    %661 = vdwg.mxu0
    %v662 = vmax.f32 %v600, 0.0
    %v663 = vmax.f32 %v603, 0.0
    %v664 = vmax.f32 %v608, 0.0
    %v665 = vmax.f32 %v611, 0.0
    %v666 = vmax.f32 %v616, 0.0
    %v667 = vmax.f32 %v619, 0.0
    %v668 = vmax.f32 %v624, 0.0
    %v669 = vmax.f32 %v627, 0.0
    %v670 = vmax.f32 %v632, 0.0
    %v671 = vmax.f32 %v635, 0.0
    %v672 = vmax.f32 %v640, 0.0
    %v673 = vmax.f32 %v643, 0.0
    %v674 = vmax.f32 %v648, 0.0
    %v675 = vmax.f32 %v651, 0.0
    %v676 = vmax.f32 %v656, 0.0
    %v677 = vmax.f32 %v659, 0.0
    %v678 = vadd.f32 %v662, %v663
    %v679 = vadd.f32 %v678, %v664
    %v680 = vadd.f32 %v679, %v665
    %v681 = vadd.f32 %v680, %v666
    %v682 = vadd.f32 %v681, %v667
    %v683 = vadd.f32 %v682, %v668
    %v684 = vadd.f32 %v683, %v669
    %v685 = vadd.f32 %v684, %v670
    %v686 = vadd.f32 %v685, %v671
    %v687 = vadd.f32 %v686, %v672
    %v688 = vadd.f32 %v687, %v673
    %v689 = vadd.f32 %v688, %v674
    %v690 = vadd.f32 %v689, %v675
    %v691 = vadd.f32 %v690, %v676
    %v692 = vadd.f32 %v691, %v677
    %v693 = vrot.slane %v692, 4
    %v694 = vadd.f32 %v692, %v693
    %v695 = vrot.slane %v694, 2
    %v696 = vadd.f32 %v694, %v695
    %v697 = vrot.slane %v696, 1
    %v698 = vadd.f32 %v696, %v697
    %v699 = vadd.f32 %v698, 0.0
    %s700 = scalar_lea.vmem %s0, 192
    %v701 = vld [vmem:[%s700] sm:$0xf]
    %v702 = vld [vmem:[%s700 + $0x4] sm:$0xf]
    %v703 = vld [vmem:[%s700 + $0x8] sm:$0xf]
    %v704 = vld [vmem:[%s700 + $0xc] sm:$0xf]
    %v705 = vld [vmem:[%s700 + $0x10] sm:$0xf]
    %v706 = vld [vmem:[%s700 + $0x14] sm:$0xf]
    %v707 = vld [vmem:[%s700 + $0x18] sm:$0xf]
    %v708 = vld [vmem:[%s700 + $0x1c] sm:$0xf]
    %v709 = vld [vmem:[%s700 + $0x20] sm:$0xf]
    %v710 = vld [vmem:[%s700 + $0x24] sm:$0xf]
    %v711 = vld [vmem:[%s700 + $0x28] sm:$0xf]
    %v712 = vld [vmem:[%s700 + $0x2c] sm:$0xf]
    %v713 = vld [vmem:[%s700 + $0x30] sm:$0xf]
    %v714 = vld [vmem:[%s700 + $0x34] sm:$0xf]
    %v715 = vld [vmem:[%s700 + $0x38] sm:$0xf]
    %v716 = vld [vmem:[%s700 + $0x3c] sm:$0xf]
    %v733 = vunpack.c.l.b16 %v701
    %v734 = vunpack.c.l.b16 %v702
    %v735 = vunpack.c.l.b16 %v703
    %v736 = vunpack.c.l.b16 %v704
    %v737 = vunpack.c.l.b16 %v705
    %v738 = vunpack.c.l.b16 %v706
    %v739 = vunpack.c.l.b16 %v707
    %v740 = vunpack.c.l.b16 %v708
    %v741 = vunpack.c.l.b16 %v709
    %v742 = vunpack.c.l.b16 %v710
    %v743 = vunpack.c.l.b16 %v711
    %v744 = vunpack.c.l.b16 %v712
    %v745 = vunpack.c.l.b16 %v713
    %v746 = vunpack.c.l.b16 %v714
    %v747 = vunpack.c.l.b16 %v715
    %v748 = vunpack.c.l.b16 %v716
    %v749 = vpack.c.b16 %v734, %v733
    %v750 = vpack.c.b16 %v736, %v735
    %v751 = vpack.c.b16 %v738, %v737
    %v752 = vpack.c.b16 %v740, %v739
    %v753 = vpack.c.b16 %v742, %v741
    %v754 = vpack.c.b16 %v744, %v743
    %v755 = vpack.c.b16 %v746, %v745
    %v756 = vpack.c.b16 %v748, %v747
    %v758 = vsel %vm101, %v749, 0
    %v761 = vsel %vm101, %v750, 0
    %v764 = vsel %vm101, %v751, 0
    %v767 = vsel %vm101, %v752, 0
    %v770 = vsel %vm101, %v753, 0
    %v773 = vsel %vm101, %v754, 0
    %v776 = vsel %vm101, %v755, 0
    %v779 = vsel %vm101, %v756, 0
    %781 = vmatprep.subr.bf16.mxu0 0
    %782 = vmatpush1.bf16.msra.mxu0 %v96
    %783 = vmatprep.subr.bf16.mxu0 0
    %784 = vmatpush1.bf16.msra.mxu0 %v97
    %785 = vmatprep.subr.bf16.mxu0 0
    %786 = vmatpush1.bf16.msra.mxu0 %v131
    %787 = vmatprep.subr.bf16.mxu0 0
    %788 = vmatpush1.bf16.msra.mxu0 0
    %789 = vmatprep.subr.bf16.mxu0 0
    %790 = vmatpush1.bf16.msra.mxu0 0
    %791 = vmatprep.subr.bf16.mxu0 0
    %792 = vmatpush1.bf16.msra.mxu0 0
    %793 = vmatprep.subr.bf16.mxu0 0
    %794 = vmatpush1.bf16.msra.mxu0 0
    %795 = vmatprep.subr.bf16.mxu0 0
    %796 = vmatpush1.bf16.msra.mxu0 0
    %797 = vmatprep.subr.bf16.mxu0 0
    %798 = vmatpush1.bf16.msra.mxu0 0
    %799 = vmatprep.subr.bf16.mxu0 0
    %800 = vmatpush1.bf16.msra.mxu0 0
    %801 = vmatprep.subr.bf16.mxu0 0
    %802 = vmatpush1.bf16.msra.mxu0 0
    %803 = vmatprep.subr.bf16.mxu0 0
    %804 = vmatpush1.bf16.msra.mxu0 0
    %805 = vmatprep.subr.bf16.mxu0 0
    %806 = vmatpush1.bf16.msra.mxu0 0
    %807 = vmatprep.subr.bf16.mxu0 0
    %808 = vmatpush1.bf16.msra.mxu0 0
    %809 = vmatprep.subr.bf16.mxu0 0
    %810 = vmatpush1.bf16.msra.mxu0 0
    %811 = vmatprep.subr.bf16.mxu0 0
    %812 = vmatpush1.bf16.msra.mxu0 0
    %813 = vmatprep.mubr.bf16.mxu0 0
    %814 = vmatmul.mubr.bf16.gmra.mrb[0].mxu0 %v758
    %v815 = vpop.f32.mrb[0].mxu0
    %v816 = vadd.f32 0.0, %v815
    %v817 = vpop.f32.mrb[0].mxu0
    %v818 = vpop.f32.mrb[0].mxu0
    %v819 = vadd.f32 0.0, %v818
    %v820 = vpop.f32.mrb[0].mxu0
    %821 = vmatprep.mubr.bf16.mxu0 0
    %822 = vmatmul.mubr.bf16.gmra.mrb[0].mxu0 %v761
    %v823 = vpop.f32.mrb[0].mxu0
    %v824 = vadd.f32 0.0, %v823
    %v825 = vpop.f32.mrb[0].mxu0
    %v826 = vpop.f32.mrb[0].mxu0
    %v827 = vadd.f32 0.0, %v826
    %v828 = vpop.f32.mrb[0].mxu0
    %829 = vmatprep.mubr.bf16.mxu0 0
    %830 = vmatmul.mubr.bf16.gmra.mrb[0].mxu0 %v764
    %v831 = vpop.f32.mrb[0].mxu0
    %v832 = vadd.f32 0.0, %v831
    %v833 = vpop.f32.mrb[0].mxu0
    %v834 = vpop.f32.mrb[0].mxu0
    %v835 = vadd.f32 0.0, %v834
    %v836 = vpop.f32.mrb[0].mxu0
    %837 = vmatprep.mubr.bf16.mxu0 0
    %838 = vmatmul.mubr.bf16.gmra.mrb[0].mxu0 %v767
    %v839 = vpop.f32.mrb[0].mxu0
    %v840 = vadd.f32 0.0, %v839
    %v841 = vpop.f32.mrb[0].mxu0
    %v842 = vpop.f32.mrb[0].mxu0
    %v843 = vadd.f32 0.0, %v842
    %v844 = vpop.f32.mrb[0].mxu0
    %845 = vmatprep.mubr.bf16.mxu0 0
    %846 = vmatmul.mubr.bf16.gmra.mrb[0].mxu0 %v770
    %v847 = vpop.f32.mrb[0].mxu0
    %v848 = vadd.f32 0.0, %v847
    %v849 = vpop.f32.mrb[0].mxu0
    %v850 = vpop.f32.mrb[0].mxu0
    %v851 = vadd.f32 0.0, %v850
    %v852 = vpop.f32.mrb[0].mxu0
    %853 = vmatprep.mubr.bf16.mxu0 0
    %854 = vmatmul.mubr.bf16.gmra.mrb[0].mxu0 %v773
    %v855 = vpop.f32.mrb[0].mxu0
    %v856 = vadd.f32 0.0, %v855
    %v857 = vpop.f32.mrb[0].mxu0
    %v858 = vpop.f32.mrb[0].mxu0
    %v859 = vadd.f32 0.0, %v858
    %v860 = vpop.f32.mrb[0].mxu0
    %861 = vmatprep.mubr.bf16.mxu0 0
    %862 = vmatmul.mubr.bf16.gmra.mrb[0].mxu0 %v776
    %v863 = vpop.f32.mrb[0].mxu0
    %v864 = vadd.f32 0.0, %v863
    %v865 = vpop.f32.mrb[0].mxu0
    %v866 = vpop.f32.mrb[0].mxu0
    %v867 = vadd.f32 0.0, %v866
    %v868 = vpop.f32.mrb[0].mxu0
    %869 = vmatprep.mubr.bf16.mxu0 0
    %870 = vmatmul.mubr.bf16.gmra.mrb[0].mxu0 %v779
    %v871 = vpop.f32.mrb[0].mxu0
    %v872 = vadd.f32 0.0, %v871
    %v873 = vpop.f32.mrb[0].mxu0
    %v874 = vpop.f32.mrb[0].mxu0
    %v875 = vadd.f32 0.0, %v874
    %v876 = vpop.f32.mrb[0].mxu0
    %877 = vdwg.mxu0
    %v878 = vmax.f32 %v816, 0.0
    %v879 = vmax.f32 %v819, 0.0
    %v880 = vmax.f32 %v824, 0.0
    %v881 = vmax.f32 %v827, 0.0
    %v882 = vmax.f32 %v832, 0.0
    %v883 = vmax.f32 %v835, 0.0
    %v884 = vmax.f32 %v840, 0.0
    %v885 = vmax.f32 %v843, 0.0
    %v886 = vmax.f32 %v848, 0.0
    %v887 = vmax.f32 %v851, 0.0
    %v888 = vmax.f32 %v856, 0.0
    %v889 = vmax.f32 %v859, 0.0
    %v890 = vmax.f32 %v864, 0.0
    %v891 = vmax.f32 %v867, 0.0
    %v892 = vmax.f32 %v872, 0.0
    %v893 = vmax.f32 %v875, 0.0
    %v894 = vadd.f32 %v878, %v879
    %v895 = vadd.f32 %v894, %v880
    %v896 = vadd.f32 %v895, %v881
    %v897 = vadd.f32 %v896, %v882
    %v898 = vadd.f32 %v897, %v883
    %v899 = vadd.f32 %v898, %v884
    %v900 = vadd.f32 %v899, %v885
    %v901 = vadd.f32 %v900, %v886
    %v902 = vadd.f32 %v901, %v887
    %v903 = vadd.f32 %v902, %v888
    %v904 = vadd.f32 %v903, %v889
    %v905 = vadd.f32 %v904, %v890
    %v906 = vadd.f32 %v905, %v891
    %v907 = vadd.f32 %v906, %v892
    %v908 = vadd.f32 %v907, %v893
    %v909 = vrot.slane %v908, 4
    %v910 = vadd.f32 %v908, %v909
    %v911 = vrot.slane %v910, 2
    %v912 = vadd.f32 %v910, %v911
    %v913 = vrot.slane %v912, 1
    %v914 = vadd.f32 %v912, %v913
    %v915 = vadd.f32 %v699, %v914
    %vm916 = vcmask 1040384
    %v917 = vsel %vm916, %v483, %v915
    %v918 = vpack.c.bf16 %v917, %v917
    %v919 = vld [vmem:[%s2] sm:$0xf]
    %v920 = vld [vmem:[%s2 + $0x4] sm:$0xf]
    %v921 = vld [vmem:[%s2 + $0x8] sm:$0xf]
    %v922 = vld [vmem:[%s2 + $0xc] sm:$0xf]
    %v923 = vld [vmem:[%s2 + $0x10] sm:$0xf]
    %v924 = vld [vmem:[%s2 + $0x14] sm:$0xf]
    %v925 = vld [vmem:[%s2 + $0x18] sm:$0xf]
    %v926 = vld [vmem:[%s2 + $0x1c] sm:$0xf]
    %v927 = vld [vmem:[%s2 + $0x20] sm:$0xf]
    %v928 = vld [vmem:[%s2 + $0x24] sm:$0xf]
    %v929 = vld [vmem:[%s2 + $0x28] sm:$0xf]
    %v930 = vld [vmem:[%s2 + $0x2c] sm:$0xf]
    %v931 = vld [vmem:[%s2 + $0x30] sm:$0xf]
    %v932 = vld [vmem:[%s2 + $0x34] sm:$0xf]
    %v933 = vld [vmem:[%s2 + $0x38] sm:$0xf]
    %v934 = vld [vmem:[%s2 + $0x3c] sm:$0xf]
    %v935 = vld [vmem:[%s3] sm:$0x1]
    %v937 = vlaneseq
    %v938 = vshrl.u32 %v937, 7
    %v939 = vsub.s32 0, %v938
    %v940 = vrot.slane %v935, %v939
    %v958 = vunpack.c.l.b16 %v919
    %v959 = vunpack.c.l.b16 %v920
    %v960 = vunpack.c.l.b16 %v921
    %v961 = vunpack.c.l.b16 %v922
    %v962 = vunpack.c.l.b16 %v923
    %v963 = vunpack.c.l.b16 %v924
    %v964 = vunpack.c.l.b16 %v925
    %v965 = vunpack.c.l.b16 %v926
    %v966 = vunpack.c.l.b16 %v927
    %v967 = vunpack.c.l.b16 %v928
    %v968 = vunpack.c.l.b16 %v929
    %v969 = vunpack.c.l.b16 %v930
    %v970 = vunpack.c.l.b16 %v931
    %v971 = vunpack.c.l.b16 %v932
    %v972 = vunpack.c.l.b16 %v933
    %v973 = vunpack.c.l.b16 %v934
    %v974 = vpack.c.b16 %v959, %v958
    %v975 = vpack.c.b16 %v961, %v960
    %v976 = vpack.c.b16 %v963, %v962
    %v977 = vpack.c.b16 %v965, %v964
    %v978 = vpack.c.b16 %v967, %v966
    %v979 = vpack.c.b16 %v969, %v968
    %v980 = vpack.c.b16 %v971, %v970
    %v981 = vpack.c.b16 %v973, %v972
    %990 = vmatprep.subr.bf16.mxu0 0
    %991 = vmatpush1.bf16.msra.mxu0 %v974
    %992 = vmatprep.subr.bf16.mxu0 0
    %993 = vmatpush1.bf16.msra.mxu0 %v975
    %994 = vmatprep.subr.bf16.mxu0 0
    %995 = vmatpush1.bf16.msra.mxu0 %v976
    %996 = vmatprep.subr.bf16.mxu0 0
    %997 = vmatpush1.bf16.msra.mxu0 %v977
    %998 = vmatprep.subr.bf16.mxu0 0
    %999 = vmatpush1.bf16.msra.mxu0 %v978
    %1000 = vmatprep.subr.bf16.mxu0 0
    %1001 = vmatpush1.bf16.msra.mxu0 %v979
    %1002 = vmatprep.subr.bf16.mxu0 0
    %1003 = vmatpush1.bf16.msra.mxu0 %v980
    %1004 = vmatprep.subr.bf16.mxu0 0
    %1005 = vmatpush1.bf16.msra.mxu0 %v981
    %1006 = vmatprep.subr.bf16.mxu0 0
    %1007 = vmatpush1.bf16.msra.mxu0 0
    %1008 = vmatprep.subr.bf16.mxu0 0
    %1009 = vmatpush1.bf16.msra.mxu0 0
    %1010 = vmatprep.subr.bf16.mxu0 0
    %1011 = vmatpush1.bf16.msra.mxu0 0
    %1012 = vmatprep.subr.bf16.mxu0 0
    %1013 = vmatpush1.bf16.msra.mxu0 0
    %1014 = vmatprep.subr.bf16.mxu0 0
    %1015 = vmatpush1.bf16.msra.mxu0 0
    %1016 = vmatprep.subr.bf16.mxu0 0
    %1017 = vmatpush1.bf16.msra.mxu0 0
    %1018 = vmatprep.subr.bf16.mxu0 0
    %1019 = vmatpush1.bf16.msra.mxu0 0
    %1020 = vmatprep.subr.bf16.mxu0 0
    %1021 = vmatpush1.bf16.msra.mxu0 0
    %1022 = vmatprep.mubr.bf16.mxu0 0
    %1023 = vmatmul.mubr.bf16.gmra.mrb[0].mxu0 %v918
    %v1024 = vpop.f32.mrb[0].mxu0
    %v1025 = vadd.f32 %v940, %v1024
    %v1026 = vpop.f32.mrb[0].mxu0
    %v1027 = vpop.f32.mrb[0].mxu0
    %v1028 = vpop.f32.mrb[0].mxu0
    %1029 = vdwg.mxu0
    %v1030 = vmul.f32 %v1025, %v1025
    %v1031 = vmul.f32 %v1025, %v1030
    %v1032 = vmul.f32 %v1031, 0.044715
    %v1033 = vadd.f32 %v1025, %v1032
    %v1034 = vmul.f32 %v1033, 0.7978846
    %v1035 = vtanh.pop %v1034
    %v1036 = vadd.f32 %v1035, 1.0
    %v1037 = vmul.f32 %v1036, 0.5
    %v1038 = vmul.f32 %v1025, %v1037
    %v1039 = vpack.c.bf16 %v1038, %v1038
    %v1040 = vld [vmem:[%s4] sm:$0xf]
    %v1041 = vld [vmem:[%s4 + $0x4] sm:$0xf]
    %v1042 = vld [vmem:[%s4 + $0x8] sm:$0xf]
    %v1043 = vld [vmem:[%s4 + $0xc] sm:$0xf]
    %v1044 = vld [vmem:[%s4 + $0x10] sm:$0xf]
    %v1045 = vld [vmem:[%s4 + $0x14] sm:$0xf]
    %v1046 = vld [vmem:[%s4 + $0x18] sm:$0xf]
    %v1047 = vld [vmem:[%s4 + $0x1c] sm:$0xf]
    %v1048 = vld [vmem:[%s4 + $0x20] sm:$0xf]
    %v1049 = vld [vmem:[%s4 + $0x24] sm:$0xf]
    %v1050 = vld [vmem:[%s4 + $0x28] sm:$0xf]
    %v1051 = vld [vmem:[%s4 + $0x2c] sm:$0xf]
    %v1052 = vld [vmem:[%s4 + $0x30] sm:$0xf]
    %v1053 = vld [vmem:[%s4 + $0x34] sm:$0xf]
    %v1054 = vld [vmem:[%s4 + $0x38] sm:$0xf]
    %v1055 = vld [vmem:[%s4 + $0x3c] sm:$0xf]
    %v1056 = vld [vmem:[%s5] sm:$0x1]
    %v1058 = vlaneseq
    %v1059 = vshrl.u32 %v1058, 7
    %v1060 = vsub.s32 0, %v1059
    %v1061 = vrot.slane %v1056, %v1060
    %v1079 = vunpack.c.l.b16 %v1040
    %v1080 = vunpack.c.l.b16 %v1041
    %v1081 = vunpack.c.l.b16 %v1042
    %v1082 = vunpack.c.l.b16 %v1043
    %v1083 = vunpack.c.l.b16 %v1044
    %v1084 = vunpack.c.l.b16 %v1045
    %v1085 = vunpack.c.l.b16 %v1046
    %v1086 = vunpack.c.l.b16 %v1047
    %v1087 = vunpack.c.l.b16 %v1048
    %v1088 = vunpack.c.l.b16 %v1049
    %v1089 = vunpack.c.l.b16 %v1050
    %v1090 = vunpack.c.l.b16 %v1051
    %v1091 = vunpack.c.l.b16 %v1052
    %v1092 = vunpack.c.l.b16 %v1053
    %v1093 = vunpack.c.l.b16 %v1054
    %v1094 = vunpack.c.l.b16 %v1055
    %v1095 = vpack.c.b16 %v1080, %v1079
    %v1096 = vpack.c.b16 %v1082, %v1081
    %v1097 = vpack.c.b16 %v1084, %v1083
    %v1098 = vpack.c.b16 %v1086, %v1085
    %v1099 = vpack.c.b16 %v1088, %v1087
    %v1100 = vpack.c.b16 %v1090, %v1089
    %v1101 = vpack.c.b16 %v1092, %v1091
    %v1102 = vpack.c.b16 %v1094, %v1093
    %1111 = vmatprep.subr.bf16.mxu0 0
    %1112 = vmatpush1.bf16.msra.mxu0 %v1095
    %1113 = vmatprep.subr.bf16.mxu0 0
    %1114 = vmatpush1.bf16.msra.mxu0 %v1096
    %1115 = vmatprep.subr.bf16.mxu0 0
    %1116 = vmatpush1.bf16.msra.mxu0 %v1097
    %1117 = vmatprep.subr.bf16.mxu0 0
    %1118 = vmatpush1.bf16.msra.mxu0 %v1098
    %1119 = vmatprep.subr.bf16.mxu0 0
    %1120 = vmatpush1.bf16.msra.mxu0 %v1099
    %1121 = vmatprep.subr.bf16.mxu0 0
    %1122 = vmatpush1.bf16.msra.mxu0 %v1100
    %1123 = vmatprep.subr.bf16.mxu0 0
    %1124 = vmatpush1.bf16.msra.mxu0 %v1101
    %1125 = vmatprep.subr.bf16.mxu0 0
    %1126 = vmatpush1.bf16.msra.mxu0 %v1102
    %1127 = vmatprep.subr.bf16.mxu0 0
    %1128 = vmatpush1.bf16.msra.mxu0 0
    %1129 = vmatprep.subr.bf16.mxu0 0
    %1130 = vmatpush1.bf16.msra.mxu0 0
    %1131 = vmatprep.subr.bf16.mxu0 0
    %1132 = vmatpush1.bf16.msra.mxu0 0
    %1133 = vmatprep.subr.bf16.mxu0 0
    %1134 = vmatpush1.bf16.msra.mxu0 0
    %1135 = vmatprep.subr.bf16.mxu0 0
    %1136 = vmatpush1.bf16.msra.mxu0 0
    %1137 = vmatprep.subr.bf16.mxu0 0
    %1138 = vmatpush1.bf16.msra.mxu0 0
    %1139 = vmatprep.subr.bf16.mxu0 0
    %1140 = vmatpush1.bf16.msra.mxu0 0
    %1141 = vmatprep.subr.bf16.mxu0 0
    %1142 = vmatpush1.bf16.msra.mxu0 0
    %1143 = vmatprep.mubr.bf16.mxu0 0
    %1144 = vmatmul.mubr.bf16.gmra.mrb[0].mxu0 %v1039
    %v1145 = vpop.f32.mrb[0].mxu0
    %v1146 = vadd.f32 %v1061, %v1145
    %v1147 = vpop.f32.mrb[0].mxu0
    %v1148 = vpop.f32.mrb[0].mxu0
    %v1149 = vpop.f32.mrb[0].mxu0
    %1150 = vdwg.mxu0
    %1151 = vst [vmem:[#allocation2] sm:$0x3] %v1146
    // Predicated region
    $region26: #{teacher_forward_impl.1} parent=1 // pred_check
      _
    $region27: #{teacher_forward_impl.1} parent=1 // pred_check_branch
      %1153 = sbr.rel (0) target = $region29
    $region28: #{teacher_forward_impl.1} parent=1 // pred_region
      %s1155 = ssub.s32 32, 32
      %1156 = vsyncadd [#allocation3], %s1155
      %s1158 = sshll.u32 [#allocation2], 4
      %s1159 = int_to_ptr.vmem [resolvable:$true] %s1158
      %1161 = dma.vmem_to_hbm [thread:$0]  %s1159, 32, %s6, [#allocation3]
    $region29: #{teacher_forward_impl.1} parent=1 // pred_fallthru
      _
    // Predicated region
    $region30: #{teacher_forward_impl.1} parent=1 // pred_check
      _
    $region31: #{teacher_forward_impl.1} parent=1 // pred_check_branch
      %1163 = sbr.rel (0) target = $region33
    $region32: #{teacher_forward_impl.1} parent=1 // pred_region
      %1164 = dma.done [#allocation3], 32
    $region33: #{teacher_forward_impl.1} parent=1 // pred_fallthru
      _
    %1165 = vsyncpa [#allocation3], 1

</llo_original>
